<compile_context>
chip_gen: v5e
topology: v5e:2x2
jax: 0.10.0
libtpu: 0.0.40
codegen_flags: <defaults>
</compile_context>

<pallas_src>
import functools

import jax
import jax.numpy as jnp
from jax.experimental import pallas as pl
from jax.experimental.pallas import tpu as pltpu


HID1 = 256
HID2 = 128
HEAD_PAD = 128  # merged actor|critic head padded to one full lane group


def _round_up(x, m):
    return ((x + m - 1) // m) * m


def actor_critic_kernel(x_ref, w1_ref, b1_ref, w2_ref, b2_ref,
                        wac_ref, bac_ref, out_ref):
    # fc1 + relu : bf16 MXU operands, f32 accumulate, f32 elementwise.
    x = x_ref[...].astype(jnp.bfloat16)
    h1 = jnp.dot(x, w1_ref[...], preferred_element_type=jnp.float32) + b1_ref[...]
    h1 = jnp.maximum(h1, 0.0)
    # fc2 + relu
    h2 = jnp.dot(h1.astype(jnp.bfloat16), w2_ref[...],
                 preferred_element_type=jnp.float32) + b2_ref[...]
    h2 = jnp.maximum(h2, 0.0)
    # merged actor|critic head -> single lane-dense [tm, 128] store
    out_ref[...] = jnp.dot(h2.astype(jnp.bfloat16), wac_ref[...],
                           preferred_element_type=jnp.float32) + bac_ref[...]


def prepare_params(params):
    """Convert f32 params into kernel-ready operands: bf16 weights, f32 biases,
    actor|critic heads concatenated and zero-padded to HEAD_PAD lanes."""
    head_w = jnp.concatenate([params["wa"], params["wc"]], axis=1)  # [128, A+1]
    head_b = jnp.concatenate([params["ba"], params["bc"]], axis=1)  # [1,   A+1]
    pad = HEAD_PAD - head_w.shape[1]
    assert pad >= 0, "action_dim + 1 must be <= HEAD_PAD"
    return dict(
        w1=params["w1"].astype(jnp.bfloat16),
        b1=params["b1"].astype(jnp.float32),
        w2=params["w2"].astype(jnp.bfloat16),
        b2=params["b2"].astype(jnp.float32),
        wac=jnp.pad(head_w, ((0, 0), (0, pad))).astype(jnp.bfloat16),
        bac=jnp.pad(head_b, ((0, 0), (0, pad))).astype(jnp.float32),
    )


@functools.partial(jax.jit, static_argnames=("action_dim", "tm"))
def actor_critic_forward(state, kparams, *, action_dim, tm=None):
    """state: [B, state_dim] f32; kparams: output of prepare_params."""
    B, state_dim = state.shape
    if tm is None:
        # Small batches -> one block (rounded to sublane multiple);
        # large batches -> 256-row tiles (well inside VMEM on v5e/v6e/v7x).
        tm = 256 if B >= 256 else _round_up(max(B, 1), 8)
    B_pad = _round_up(B, tm)
    x = state if B_pad == B else jnp.pad(state, ((0, B_pad - B), (0, 0)))

    const2d = lambda shape: pl.BlockSpec(shape, lambda i: (0, 0))

    out = pl.pallas_call(
        actor_critic_kernel,
        out_shape=jax.ShapeDtypeStruct((B_pad, HEAD_PAD), jnp.float32),
        grid=(B_pad // tm,),
        in_specs=[
            pl.BlockSpec((tm, state_dim), lambda i: (i, 0)),    # x tile
            const2d((state_dim, HID1)), const2d((1, HID1)),     # fc1 (VMEM-resident)
            const2d((HID1, HID2)),      const2d((1, HID2)),     # fc2 (VMEM-resident)
            const2d((HID2, HEAD_PAD)),  const2d((1, HEAD_PAD)), # merged head
        ],
        out_specs=pl.BlockSpec((tm, HEAD_PAD), lambda i: (i, 0)),
        compiler_params=pltpu.CompilerParams(
            dimension_semantics=("parallel",)),
    )(x, kparams["w1"], kparams["b1"], kparams["w2"], kparams["b2"],
      kparams["wac"], kparams["bac"])

    logits = out[:B, :action_dim]
    value = out[:B, action_dim:action_dim + 1]
    return logits, value


def init_params(key, state_dim, action_dim):
    """Deterministic init mirroring nn.Linear default (U(-1/sqrt(fan_in), +))."""
    def linear(key, fan_in, fan_out):
        kw, kb = jax.random.split(key)
        bound = 1.0 / jnp.sqrt(fan_in)
        w = jax.random.uniform(kw, (fan_in, fan_out), jnp.float32, -bound, bound)
        b = jax.random.uniform(kb, (1, fan_out), jnp.float32, -bound, bound)
        return w, b

    k1, k2, k3, k4 = jax.random.split(key, 4)
    w1, b1 = linear(k1, state_dim, HID1)
    w2, b2 = linear(k2, HID1, HID2)
    wa, ba = linear(k3, HID2, action_dim)
    wc, bc = linear(k4, HID2, 1)
    return dict(w1=w1, b1=b1, w2=w2, b2=b2, wa=wa, ba=ba, wc=wc, bc=bc)


def reference_forward(state, p):
    """Pure-JAX reference mirroring the kernel's bf16 matmul / f32 math."""
    def mm(a, w):
        return jnp.dot(a.astype(jnp.bfloat16), w.astype(jnp.bfloat16),
                       preferred_element_type=jnp.float32)
    h1 = jnp.maximum(mm(state, p["w1"]) + p["b1"], 0.0)
    h2 = jnp.maximum(mm(h1, p["w2"]) + p["b2"], 0.0)
    return mm(h2, p["wa"]) + p["ba"], mm(h2, p["wc"]) + p["bc"]


if __name__ == "__main__":
    key = jax.random.PRNGKey(0)
    k_state, k_params, k_big = jax.random.split(key, 3)

    B, state_dim, action_dim = 2, 32, 8
    state = jax.random.normal(k_state, (B, state_dim), jnp.float32)
    params = init_params(k_params, state_dim, action_dim)
    kparams = prepare_params(params)

    # Small-batch path (single block, padded batch rows).
    logits, value = actor_critic_forward(state, kparams, action_dim=action_dim)
    jax.block_until_ready((logits, value))
    ref_logits, ref_value = reference_forward(state, params)
    assert logits.shape == (B, action_dim) and value.shape == (B, 1)
    assert jnp.allclose(logits, ref_logits, atol=1e-3, rtol=1e-3)
    assert jnp.allclose(value, ref_value, atol=1e-3, rtol=1e-3)

    # Tiled path (grid > 1, non-multiple batch exercises padding).
    Bb = 300
    big_state = jax.random.normal(k_big, (Bb, state_dim), jnp.float32)
    big_logits, big_value = actor_critic_forward(
        big_state, kparams, action_dim=action_dim, tm=128)
    jax.block_until_ready((big_logits, big_value))
    rl, rv = reference_forward(big_state, params)
    assert big_logits.shape == (Bb, action_dim) and big_value.shape == (Bb, 1)
    assert jnp.allclose(big_logits, rl, atol=1e-3, rtol=1e-3)
    assert jnp.allclose(big_value, rv, atol=1e-3, rtol=1e-3)

    print("KERNEL_OK")
</pallas_src>

<mosaic_0001>
module attributes {stable_mosaic.version = 11 : i64} {
  func.func @actor_critic_kernel(%arg0: i32, %arg1: memref<8x32xf32, #tpu.memory_space<vmem>>, %arg2: memref<32x256xbf16, #tpu.memory_space<vmem>>, %arg3: memref<1x256xf32, #tpu.memory_space<vmem>>, %arg4: memref<256x128xbf16, #tpu.memory_space<vmem>>, %arg5: memref<1x128xf32, #tpu.memory_space<vmem>>, %arg6: memref<128x128xbf16, #tpu.memory_space<vmem>>, %arg7: memref<1x128xf32, #tpu.memory_space<vmem>>, %arg8: memref<8x128xf32, #tpu.memory_space<vmem>>) attributes {dimension_semantics = [#tpu.dimension_semantics<parallel>], iteration_bounds = array<i64: 1>, scalar_prefetch = 0 : i64, scratch_operands = 0 : i64, tpu.core_type = #tpu.core_type<tc>, window_params = [{transform_indices = @transform_0, window_bounds = array<i64: 8, 32>}, {pipeline_mode = #tpu.pipeline_mode<synchronous>, transform_indices = @transform_1, window_bounds = array<i64: 32, 256>}, {pipeline_mode = #tpu.pipeline_mode<synchronous>, transform_indices = @transform_2, window_bounds = array<i64: 1, 256>}, {pipeline_mode = #tpu.pipeline_mode<synchronous>, transform_indices = @transform_3, window_bounds = array<i64: 256, 128>}, {pipeline_mode = #tpu.pipeline_mode<synchronous>, transform_indices = @transform_4, window_bounds = array<i64: 1, 128>}, {pipeline_mode = #tpu.pipeline_mode<synchronous>, transform_indices = @transform_5, window_bounds = array<i64: 128, 128>}, {pipeline_mode = #tpu.pipeline_mode<synchronous>, transform_indices = @transform_6, window_bounds = array<i64: 1, 128>}, {transform_indices = @transform_7, window_bounds = array<i64: 8, 128>}]} {
    %c0 = arith.constant 0 : index
    %c0_0 = arith.constant 0 : index
    %0 = vector.load %arg1[%c0, %c0_0] : memref<8x32xf32, #tpu.memory_space<vmem>>, vector<8x32xf32>
    %1 = arith.truncf %0 : vector<8x32xf32> to vector<8x32xbf16>
    %c0_1 = arith.constant 0 : index
    %c0_2 = arith.constant 0 : index
    %2 = vector.load %arg2[%c0_1, %c0_2] : memref<32x256xbf16, #tpu.memory_space<vmem>>, vector<32x256xbf16>
    %cst = arith.constant dense<0.000000e+00> : vector<8x256xf32>
    %3 = tpu.matmul %1, %2, %cst {dimension_numbers = #tpu.dot_dimension_numbers<[1], [0], [0], [1], [0, 0, 1, 1], [], []>} : vector<8x32xbf16>, vector<32x256xbf16>, vector<8x256xf32> -> vector<8x256xf32>
    %c0_3 = arith.constant 0 : index
    %c0_4 = arith.constant 0 : index
    %4 = vector.load %arg3[%c0_3, %c0_4] : memref<1x256xf32, #tpu.memory_space<vmem>>, vector<1x256xf32>
    %5 = vector.broadcast %4 : vector<1x256xf32> to vector<8x256xf32>
    %6 = arith.addf %3, %5 : vector<8x256xf32>
    %cst_5 = arith.constant 0.000000e+00 : f32
    %7 = vector.broadcast %cst_5 : f32 to vector<8x256xf32>
    %8 = arith.maximumf %6, %7 : vector<8x256xf32>
    %9 = arith.truncf %8 : vector<8x256xf32> to vector<8x256xbf16>
    %c0_6 = arith.constant 0 : index
    %c0_7 = arith.constant 0 : index
    %10 = vector.load %arg4[%c0_6, %c0_7] : memref<256x128xbf16, #tpu.memory_space<vmem>>, vector<256x128xbf16>
    %cst_8 = arith.constant dense<0.000000e+00> : vector<8x128xf32>
    %11 = tpu.matmul %9, %10, %cst_8 {dimension_numbers = #tpu.dot_dimension_numbers<[1], [0], [0], [1], [0, 0, 1, 1], [], []>} : vector<8x256xbf16>, vector<256x128xbf16>, vector<8x128xf32> -> vector<8x128xf32>
    %c0_9 = arith.constant 0 : index
    %c0_10 = arith.constant 0 : index
    %12 = vector.load %arg5[%c0_9, %c0_10] : memref<1x128xf32, #tpu.memory_space<vmem>>, vector<1x128xf32>
    %13 = vector.broadcast %12 : vector<1x128xf32> to vector<8x128xf32>
    %14 = arith.addf %11, %13 : vector<8x128xf32>
    %cst_11 = arith.constant 0.000000e+00 : f32
    %15 = vector.broadcast %cst_11 : f32 to vector<8x128xf32>
    %16 = arith.maximumf %14, %15 : vector<8x128xf32>
    %17 = arith.truncf %16 : vector<8x128xf32> to vector<8x128xbf16>
    %c0_12 = arith.constant 0 : index
    %c0_13 = arith.constant 0 : index
    %18 = vector.load %arg6[%c0_12, %c0_13] : memref<128x128xbf16, #tpu.memory_space<vmem>>, vector<128x128xbf16>
    %cst_14 = arith.constant dense<0.000000e+00> : vector<8x128xf32>
    %19 = tpu.matmul %17, %18, %cst_14 {dimension_numbers = #tpu.dot_dimension_numbers<[1], [0], [0], [1], [0, 0, 1, 1], [], []>} : vector<8x128xbf16>, vector<128x128xbf16>, vector<8x128xf32> -> vector<8x128xf32>
    %c0_15 = arith.constant 0 : index
    %c0_16 = arith.constant 0 : index
    %20 = vector.load %arg7[%c0_15, %c0_16] : memref<1x128xf32, #tpu.memory_space<vmem>>, vector<1x128xf32>
    %21 = vector.broadcast %20 : vector<1x128xf32> to vector<8x128xf32>
    %22 = arith.addf %19, %21 : vector<8x128xf32>
    %c0_17 = arith.constant 0 : index
    %c0_18 = arith.constant 0 : index
    %23 = vector.load %arg8[%c0_17, %c0_18] : memref<8x128xf32, #tpu.memory_space<vmem>>, vector<8x128xf32>
    tpu.vector_store %arg8[%c0_17, %c0_18], %22 {strides = array<i32>} : memref<8x128xf32, #tpu.memory_space<vmem>>, vector<8x128xf32>,
    return
  }
  func.func @transform_0(%arg0: i32) -> (i32, i32) {
    %c0_i32 = arith.constant 0 : i32
    %c0_i32_0 = arith.constant 0 : i32
    return %arg0, %c0_i32 : i32, i32
  }
  func.func @transform_1(%arg0: i32) -> (i32, i32) {
    %c0_i32 = arith.constant 0 : i32
    %c0_i32_0 = arith.constant 0 : i32
    %c0_i32_1 = arith.constant 0 : i32
    return %c0_i32, %c0_i32_0 : i32, i32
  }
  func.func @transform_2(%arg0: i32) -> (i32, i32) {
    %c0_i32 = arith.constant 0 : i32
    %c0_i32_0 = arith.constant 0 : i32
    %c0_i32_1 = arith.constant 0 : i32
    return %c0_i32, %c0_i32_0 : i32, i32
  }
  func.func @transform_3(%arg0: i32) -> (i32, i32) {
    %c0_i32 = arith.constant 0 : i32
    %c0_i32_0 = arith.constant 0 : i32
    %c0_i32_1 = arith.constant 0 : i32
    return %c0_i32, %c0_i32_0 : i32, i32
  }
  func.func @transform_4(%arg0: i32) -> (i32, i32) {
    %c0_i32 = arith.constant 0 : i32
    %c0_i32_0 = arith.constant 0 : i32
    %c0_i32_1 = arith.constant 0 : i32
    return %c0_i32, %c0_i32_0 : i32, i32
  }
  func.func @transform_5(%arg0: i32) -> (i32, i32) {
    %c0_i32 = arith.constant 0 : i32
    %c0_i32_0 = arith.constant 0 : i32
    %c0_i32_1 = arith.constant 0 : i32
    return %c0_i32, %c0_i32_0 : i32, i32
  }
  func.func @transform_6(%arg0: i32) -> (i32, i32) {
    %c0_i32 = arith.constant 0 : i32
    %c0_i32_0 = arith.constant 0 : i32
    %c0_i32_1 = arith.constant 0 : i32
    return %c0_i32, %c0_i32_0 : i32, i32
  }
  func.func @transform_7(%arg0: i32) -> (i32, i32) {
    %c0_i32 = arith.constant 0 : i32
    %c0_i32_0 = arith.constant 0 : i32
    return %arg0, %c0_i32 : i32, i32
  }
}

</mosaic_0001>

<llo_original>
// kernel: actor_critic_forward.1
$region0: #{actor_critic_forward.1}
  #allocation0 [shape = 'u32[]', space=smem, size = 0x4, offset = 0x4, fixed_abs, tag = 'smem constant byte address 0x4 - core index']
  #allocation1 [shape = 'u32[72,128]{1,0:T(1,128)}', space=vmem, size = 0x9000, scoped, tag = 'internal scratch']
  %s0 = inlined_call_operand.vmem [shape: f32[8,32], index: 0, kind: input, shape index: {}]
  %s1 = inlined_call_operand.hbm [shape: bf16[32,256], index: 1, kind: input, shape index: {}]
  %s2 = inlined_call_operand.vmem [shape: f32[1,256], index: 2, kind: input, shape index: {}]
  %s3 = inlined_call_operand.hbm [shape: bf16[256,128], index: 3, kind: input, shape index: {}]
  %s4 = inlined_call_operand.vmem [shape: f32[1,128], index: 4, kind: input, shape index: {}]
  %s5 = inlined_call_operand.hbm [shape: bf16[128,128], index: 5, kind: input, shape index: {}]
  %s6 = inlined_call_operand.vmem [shape: f32[1,128], index: 6, kind: input, shape index: {}]
  %s7 = inlined_call_operand.vmem [shape: f32[8,128], index: 7, kind: output, shape index: {}]
  %s8 = sld [smem:[#allocation0]]
  $region50: #{actor_critic_forward.1} parent=0
    _
  %s10 = ssub.s32 1, %s8
  %s11 = scalar_select 0, %s10, %s8
  $region1: #{actor_critic_forward.1} parent=0
    #allocation2 [shape = 'u8[16384]{0}', space=vmem, size = 0x4000, scoped, tag = 'input window, operand 1, single buffered']
    #allocation3 [shape = 's32[1]{0}', space=sflag, size = 0x4, scoped, tag = 'scoped memory for actor_critic_forward.1']
    #allocation4 [shape = 'u8[65536]{0}', space=vmem, size = 0x10000, scoped, tag = 'input window, operand 3, single buffered']
    #allocation5 [shape = 's32[1]{0}', space=sflag, size = 0x4, scoped, tag = 'scoped memory for actor_critic_forward.1']
    #allocation6 [shape = 'u8[32768]{0}', space=vmem, size = 0x8000, scoped, tag = 'input window, operand 5, single buffered']
    %12 = vsyncpa [#allocation3], 0
    %13 = vsyncpa [#allocation5], 0
    // Predicated region
    $region2: #{actor_critic_forward.1} parent=1 // pred_check
      _
    $region3: #{actor_critic_forward.1} parent=1 // pred_check_branch
      %15 = sbr.rel (0) target = $region5
    $region4: #{actor_critic_forward.1} parent=1 // pred_region
      _
    $region5: #{actor_critic_forward.1} parent=1 // pred_fallthru
      _
    // Predicated region
    $region6: #{actor_critic_forward.1} parent=1 // pred_check
      _
    $region7: #{actor_critic_forward.1} parent=1 // pred_check_branch
      %17 = sbr.rel (0) target = $region9
    $region8: #{actor_critic_forward.1} parent=1 // pred_region
      %19 = vsyncadd [#allocation3], 0
      %s20 = sshll.u32 %s1, 4
      %s21 = int_to_ptr.hbm [resolvable:$true] %s20
      %s22 = sshll.u32 [#allocation2], 4
      %s23 = int_to_ptr.vmem [resolvable:$true] %s22
      %28 = dma.hbm_to_vmem [thread:$0]  %s21, 512, %s23, [#allocation3], 128, 128, 8
    $region9: #{actor_critic_forward.1} parent=1 // pred_fallthru
      _
    // Predicated region
    $region10: #{actor_critic_forward.1} parent=1 // pred_check
      _
    $region11: #{actor_critic_forward.1} parent=1 // pred_check_branch
      %30 = sbr.rel (0) target = $region13
    $region12: #{actor_critic_forward.1} parent=1 // pred_region
      _
    $region13: #{actor_critic_forward.1} parent=1 // pred_fallthru
      _
    // Predicated region
    $region14: #{actor_critic_forward.1} parent=1 // pred_check
      _
    $region15: #{actor_critic_forward.1} parent=1 // pred_check_branch
      %32 = sbr.rel (0) target = $region17
    $region16: #{actor_critic_forward.1} parent=1 // pred_region
      %34 = vsyncadd [#allocation5], 0
      %s35 = sshll.u32 %s3, 4
      %s36 = int_to_ptr.hbm [resolvable:$true] %s35
      %s37 = sshll.u32 [#allocation4], 4
      %s38 = int_to_ptr.vmem [resolvable:$true] %s37
      %43 = dma.hbm_to_vmem [thread:$0]  %s36, 2048, %s38, [#allocation5], 64, 64, 4
    $region17: #{actor_critic_forward.1} parent=1 // pred_fallthru
      _
    // Predicated region
    $region18: #{actor_critic_forward.1} parent=1 // pred_check
      _
    $region19: #{actor_critic_forward.1} parent=1 // pred_check_branch
      %45 = sbr.rel (0) target = $region21
    $region20: #{actor_critic_forward.1} parent=1 // pred_region
      _
    $region21: #{actor_critic_forward.1} parent=1 // pred_fallthru
      _
    // Predicated region
    $region22: #{actor_critic_forward.1} parent=1 // pred_check
      _
    $region23: #{actor_critic_forward.1} parent=1 // pred_check_branch
      %47 = sbr.rel (0) target = $region25
    $region24: #{actor_critic_forward.1} parent=1 // pred_region
      %49 = vsyncadd [#allocation5], 0
      %s50 = sshll.u32 %s5, 4
      %s51 = int_to_ptr.hbm [resolvable:$true] %s50
      %s52 = sshll.u32 [#allocation6], 4
      %s53 = int_to_ptr.vmem [resolvable:$true] %s52
      %58 = dma.hbm_to_vmem [thread:$0]  %s51, 1024, %s53, [#allocation5], 64, 64, 4
    $region25: #{actor_critic_forward.1} parent=1 // pred_fallthru
      _
    // Predicated region
    $region26: #{actor_critic_forward.1} parent=1 // pred_check
      _
    $region27: #{actor_critic_forward.1} parent=1 // pred_check_branch
      %60 = sbr.rel (0) target = $region29
    $region28: #{actor_critic_forward.1} parent=1 // pred_region
      _
    $region29: #{actor_critic_forward.1} parent=1 // pred_fallthru
      _
    // Predicated region
    $region30: #{actor_critic_forward.1} parent=1 // pred_check
      _
    $region31: #{actor_critic_forward.1} parent=1 // pred_check_branch
      %62 = sbr.rel (0) target = $region33
    $region32: #{actor_critic_forward.1} parent=1 // pred_region
      %64 = dma.done [#allocation3], 512
    $region33: #{actor_critic_forward.1} parent=1 // pred_fallthru
      _
    // Predicated region
    $region34: #{actor_critic_forward.1} parent=1 // pred_check
      _
    $region35: #{actor_critic_forward.1} parent=1 // pred_check_branch
      %66 = sbr.rel (0) target = $region37
    $region36: #{actor_critic_forward.1} parent=1 // pred_region
      %68 = dma.done [#allocation5], 2048
    $region37: #{actor_critic_forward.1} parent=1 // pred_fallthru
      _
    // Predicated region
    $region38: #{actor_critic_forward.1} parent=1 // pred_check
      _
    $region39: #{actor_critic_forward.1} parent=1 // pred_check_branch
      %70 = sbr.rel (0) target = $region41
    $region40: #{actor_critic_forward.1} parent=1 // pred_region
      %72 = dma.done [#allocation5], 1024
    $region41: #{actor_critic_forward.1} parent=1 // pred_fallthru
      _
    %v74 = vld [vmem:[%s0] sm:$0xff]
    %v75 = vpack.c.bf16 %v74, %v74
    %v76 = vld [vmem:[#allocation2] sm:$0xff]
    %v77 = vld [vmem:[#allocation2 + $0x8] sm:$0xff]
    %v78 = vld [vmem:[#allocation2 + $0x10] sm:$0xff]
    %v79 = vld [vmem:[#allocation2 + $0x18] sm:$0xff]
    %v80 = vld [vmem:[%s2] sm:$0x3]
    %v82 = vperm.slane %v80, 0
    %v83 = vperm.slane %v80, 1
    %v90 = vunpack.c.l.b16 %v76
    %v91 = vunpack.c.h.b16 %v76
    %v92 = vunpack.c.l.b16 %v77
    %v93 = vunpack.c.h.b16 %v77
    %v94 = vunpack.c.l.b16 %v78
    %v95 = vunpack.c.h.b16 %v78
    %v96 = vunpack.c.l.b16 %v79
    %v97 = vunpack.c.h.b16 %v79
    %v98 = vpack.c.b16 %v92, %v90
    %v99 = vpack.c.b16 %v93, %v91
    %v100 = vpack.c.b16 %v96, %v94
    %v101 = vpack.c.b16 %v97, %v95
    %vm106 = vcmask 261120
    %v108 = vsel %vm106, %v75, 0
    %110 = vmatpush.bf16.msra.mxu0 0
    %111 = vmatpush.bf16.msra.mxu0 0
    %112 = vmatpush.bf16.msra.mxu0 0
    %113 = vmatpush.bf16.msra.mxu0 0
    %114 = vmatpush.bf16.msra.mxu0 0
    %115 = vmatpush.bf16.msra.mxu0 0
    %116 = vmatpush.bf16.msra.mxu0 %v100
    %117 = vmatpush.bf16.msra.mxu0 %v98
    %118 = vmatmul.bf16.gmra.mxu0 %v108
    %v119 = vpop.f32.mrf.mxu0
    %v120 = vadd.f32 %v82, %v119
    %v121 = vpop.f32.mrf.mxu0
    %122 = vdwg.mxu0
    %123 = vmatpush.bf16.msra.mxu0 0
    %124 = vmatpush.bf16.msra.mxu0 0
    %125 = vmatpush.bf16.msra.mxu0 0
    %126 = vmatpush.bf16.msra.mxu0 0
    %127 = vmatpush.bf16.msra.mxu0 0
    %128 = vmatpush.bf16.msra.mxu0 0
    %129 = vmatpush.bf16.msra.mxu0 %v101
    %130 = vmatpush.bf16.msra.mxu0 %v99
    %131 = vmatmul.bf16.gmra.mxu0 %v108
    %v132 = vpop.f32.mrf.mxu0
    %v133 = vadd.f32 %v83, %v132
    %v134 = vpop.f32.mrf.mxu0
    %135 = vdwg.mxu0
    %v136 = vmax.f32 %v120, 0.0
    %v137 = vmax.f32 %v133, 0.0
    %v138 = vpack.c.bf16 %v136, %v136
    %v139 = vpack.c.bf16 %v137, %v137
    %v140 = vld [vmem:[#allocation4] sm:$0xf]
    %v141 = vld [vmem:[#allocation4 + $0x4] sm:$0xf]
    %v142 = vld [vmem:[#allocation4 + $0x8] sm:$0xf]
    %v143 = vld [vmem:[#allocation4 + $0xc] sm:$0xf]
    %v144 = vld [vmem:[#allocation4 + $0x10] sm:$0xf]
    %v145 = vld [vmem:[#allocation4 + $0x14] sm:$0xf]
    %v146 = vld [vmem:[#allocation4 + $0x18] sm:$0xf]
    %v147 = vld [vmem:[#allocation4 + $0x1c] sm:$0xf]
    %v148 = vld [vmem:[#allocation4 + $0x20] sm:$0xf]
    %v149 = vld [vmem:[#allocation4 + $0x24] sm:$0xf]
    %v150 = vld [vmem:[#allocation4 + $0x28] sm:$0xf]
    %v151 = vld [vmem:[#allocation4 + $0x2c] sm:$0xf]
    %v152 = vld [vmem:[#allocation4 + $0x30] sm:$0xf]
    %v153 = vld [vmem:[#allocation4 + $0x34] sm:$0xf]
    %v154 = vld [vmem:[#allocation4 + $0x38] sm:$0xf]
    %v155 = vld [vmem:[#allocation4 + $0x3c] sm:$0xf]
    %v156 = vld [vmem:[#allocation4 + $0x40] sm:$0xf]
    %v157 = vld [vmem:[#allocation4 + $0x44] sm:$0xf]
    %v158 = vld [vmem:[#allocation4 + $0x48] sm:$0xf]
    %v159 = vld [vmem:[#allocation4 + $0x4c] sm:$0xf]
    %v160 = vld [vmem:[#allocation4 + $0x50] sm:$0xf]
    %v161 = vld [vmem:[#allocation4 + $0x54] sm:$0xf]
    %v162 = vld [vmem:[#allocation4 + $0x58] sm:$0xf]
    %v163 = vld [vmem:[#allocation4 + $0x5c] sm:$0xf]
    %v164 = vld [vmem:[#allocation4 + $0x60] sm:$0xf]
    %v165 = vld [vmem:[#allocation4 + $0x64] sm:$0xf]
    %v166 = vld [vmem:[#allocation4 + $0x68] sm:$0xf]
    %v167 = vld [vmem:[#allocation4 + $0x6c] sm:$0xf]
    %v168 = vld [vmem:[#allocation4 + $0x70] sm:$0xf]
    %v169 = vld [vmem:[#allocation4 + $0x74] sm:$0xf]
    %v170 = vld [vmem:[#allocation4 + $0x78] sm:$0xf]
    %v171 = vld [vmem:[#allocation4 + $0x7c] sm:$0xf]
    %v172 = vld [vmem:[%s4] sm:$0x1]
    %v174 = vperm.slane %v172, 0
    %v208 = vunpack.c.l.b16 %v140
    %v209 = vunpack.c.l.b16 %v141
    %v210 = vunpack.c.l.b16 %v142
    %v211 = vunpack.c.l.b16 %v143
    %v212 = vunpack.c.l.b16 %v144
    %v213 = vunpack.c.l.b16 %v145
    %v214 = vunpack.c.l.b16 %v146
    %v215 = vunpack.c.l.b16 %v147
    %v216 = vunpack.c.l.b16 %v148
    %v217 = vunpack.c.l.b16 %v149
    %v218 = vunpack.c.l.b16 %v150
    %v219 = vunpack.c.l.b16 %v151
    %v220 = vunpack.c.l.b16 %v152
    %v221 = vunpack.c.l.b16 %v153
    %v222 = vunpack.c.l.b16 %v154
    %v223 = vunpack.c.l.b16 %v155
    %v224 = vunpack.c.l.b16 %v156
    %v225 = vunpack.c.l.b16 %v157
    %v226 = vunpack.c.l.b16 %v158
    %v227 = vunpack.c.l.b16 %v159
    %v228 = vunpack.c.l.b16 %v160
    %v229 = vunpack.c.l.b16 %v161
    %v230 = vunpack.c.l.b16 %v162
    %v231 = vunpack.c.l.b16 %v163
    %v232 = vunpack.c.l.b16 %v164
    %v233 = vunpack.c.l.b16 %v165
    %v234 = vunpack.c.l.b16 %v166
    %v235 = vunpack.c.l.b16 %v167
    %v236 = vunpack.c.l.b16 %v168
    %v237 = vunpack.c.l.b16 %v169
    %v238 = vunpack.c.l.b16 %v170
    %v239 = vunpack.c.l.b16 %v171
    %v240 = vpack.c.b16 %v209, %v208
    %v241 = vpack.c.b16 %v211, %v210
    %v242 = vpack.c.b16 %v213, %v212
    %v243 = vpack.c.b16 %v215, %v214
    %v244 = vpack.c.b16 %v217, %v216
    %v245 = vpack.c.b16 %v219, %v218
    %v246 = vpack.c.b16 %v221, %v220
    %v247 = vpack.c.b16 %v223, %v222
    %v248 = vpack.c.b16 %v225, %v224
    %v249 = vpack.c.b16 %v227, %v226
    %v250 = vpack.c.b16 %v229, %v228
    %v251 = vpack.c.b16 %v231, %v230
    %v252 = vpack.c.b16 %v233, %v232
    %v253 = vpack.c.b16 %v235, %v234
    %v254 = vpack.c.b16 %v237, %v236
    %v255 = vpack.c.b16 %v239, %v238
    %272 = vmatpush.bf16.msra.mxu0 %v247
    %273 = vmatpush.bf16.msra.mxu0 %v246
    %274 = vmatpush.bf16.msra.mxu0 %v245
    %275 = vmatpush.bf16.msra.mxu0 %v244
    %276 = vmatpush.bf16.msra.mxu0 %v243
    %277 = vmatpush.bf16.msra.mxu0 %v242
    %278 = vmatpush.bf16.msra.mxu0 %v241
    %279 = vmatpush.bf16.msra.mxu0 %v240
    %280 = vmatmul.bf16.gmra.mxu0 %v138
    %v281 = vpop.f32.mrf.mxu0
    %v282 = vadd.f32 %v174, %v281
    %v283 = vpop.f32.mrf.mxu0
    %284 = vdwg.mxu0
    %285 = vmatpush.bf16.msra.mxu0 %v255
    %286 = vmatpush.bf16.msra.mxu0 %v254
    %287 = vmatpush.bf16.msra.mxu0 %v253
    %288 = vmatpush.bf16.msra.mxu0 %v252
    %289 = vmatpush.bf16.msra.mxu0 %v251
    %290 = vmatpush.bf16.msra.mxu0 %v250
    %291 = vmatpush.bf16.msra.mxu0 %v249
    %292 = vmatpush.bf16.msra.mxu0 %v248
    %293 = vmatmul.bf16.gmra.mxu0 %v139
    %v294 = vpop.f32.mrf.mxu0
    %v295 = vadd.f32 %v282, %v294
    %v296 = vpop.f32.mrf.mxu0
    %297 = vdwg.mxu0
    %v298 = vmax.f32 %v295, 0.0
    %v299 = vpack.c.bf16 %v298, %v298
    %v300 = vld [vmem:[#allocation6] sm:$0xf]
    %v301 = vld [vmem:[#allocation6 + $0x4] sm:$0xf]
    %v302 = vld [vmem:[#allocation6 + $0x8] sm:$0xf]
    %v303 = vld [vmem:[#allocation6 + $0xc] sm:$0xf]
    %v304 = vld [vmem:[#allocation6 + $0x10] sm:$0xf]
    %v305 = vld [vmem:[#allocation6 + $0x14] sm:$0xf]
    %v306 = vld [vmem:[#allocation6 + $0x18] sm:$0xf]
    %v307 = vld [vmem:[#allocation6 + $0x1c] sm:$0xf]
    %v308 = vld [vmem:[#allocation6 + $0x20] sm:$0xf]
    %v309 = vld [vmem:[#allocation6 + $0x24] sm:$0xf]
    %v310 = vld [vmem:[#allocation6 + $0x28] sm:$0xf]
    %v311 = vld [vmem:[#allocation6 + $0x2c] sm:$0xf]
    %v312 = vld [vmem:[#allocation6 + $0x30] sm:$0xf]
    %v313 = vld [vmem:[#allocation6 + $0x34] sm:$0xf]
    %v314 = vld [vmem:[#allocation6 + $0x38] sm:$0xf]
    %v315 = vld [vmem:[#allocation6 + $0x3c] sm:$0xf]
    %v316 = vld [vmem:[%s6] sm:$0x1]
    %v318 = vperm.slane %v316, 0
    %v336 = vunpack.c.l.b16 %v300
    %v337 = vunpack.c.l.b16 %v301
    %v338 = vunpack.c.l.b16 %v302
    %v339 = vunpack.c.l.b16 %v303
    %v340 = vunpack.c.l.b16 %v304
    %v341 = vunpack.c.l.b16 %v305
    %v342 = vunpack.c.l.b16 %v306
    %v343 = vunpack.c.l.b16 %v307
    %v344 = vunpack.c.l.b16 %v308
    %v345 = vunpack.c.l.b16 %v309
    %v346 = vunpack.c.l.b16 %v310
    %v347 = vunpack.c.l.b16 %v311
    %v348 = vunpack.c.l.b16 %v312
    %v349 = vunpack.c.l.b16 %v313
    %v350 = vunpack.c.l.b16 %v314
    %v351 = vunpack.c.l.b16 %v315
    %v352 = vpack.c.b16 %v337, %v336
    %v353 = vpack.c.b16 %v339, %v338
    %v354 = vpack.c.b16 %v341, %v340
    %v355 = vpack.c.b16 %v343, %v342
    %v356 = vpack.c.b16 %v345, %v344
    %v357 = vpack.c.b16 %v347, %v346
    %v358 = vpack.c.b16 %v349, %v348
    %v359 = vpack.c.b16 %v351, %v350
    %368 = vmatpush.bf16.msra.mxu0 %v359
    %369 = vmatpush.bf16.msra.mxu0 %v358
    %370 = vmatpush.bf16.msra.mxu0 %v357
    %371 = vmatpush.bf16.msra.mxu0 %v356
    %372 = vmatpush.bf16.msra.mxu0 %v355
    %373 = vmatpush.bf16.msra.mxu0 %v354
    %374 = vmatpush.bf16.msra.mxu0 %v353
    %375 = vmatpush.bf16.msra.mxu0 %v352
    %376 = vmatmul.bf16.gmra.mxu0 %v299
    %v377 = vpop.f32.mrf.mxu0
    %v378 = vadd.f32 %v318, %v377
    %v379 = vpop.f32.mrf.mxu0
    %380 = vdwg.mxu0
    %381 = vst [vmem:[%s7] sm:$0xff] %v378
    // Predicated region
    $region42: #{actor_critic_forward.1} parent=1 // pred_check
      _
    $region43: #{actor_critic_forward.1} parent=1 // pred_check_branch
      %383 = sbr.rel (0) target = $region45
    $region44: #{actor_critic_forward.1} parent=1 // pred_region
      _
    $region45: #{actor_critic_forward.1} parent=1 // pred_fallthru
      _
    // Predicated region
    $region46: #{actor_critic_forward.1} parent=1 // pred_check
      _
    $region47: #{actor_critic_forward.1} parent=1 // pred_check_branch
      %385 = sbr.rel (0) target = $region49
    $region48: #{actor_critic_forward.1} parent=1 // pred_region
      _
    $region49: #{actor_critic_forward.1} parent=1 // pred_fallthru
      _
    %386 = vsyncpa [#allocation3], 1
    %387 = vsyncpa [#allocation5], 1

</llo_original>
